<compile_context>
chip_gen: v6e
topology: v6e:2x2x1
jax: 0.10.0
libtpu: 0.0.40
codegen_flags: <defaults>
</compile_context>

<pallas_src>
import math

import jax
import jax.numpy as jnp
from jax.experimental import pallas as pl
from jax.experimental.pallas import tpu as pltpu

_LANE = 128
_TARGET_BLOCK_BYTES = 6 * 1024 * 1024   # ~6 MiB per x/out/pe block
_VMEM_LIMIT_BYTES = 48 * 1024 * 1024    # 3 streams x 2 buffers x 6 MiB + headroom


def _pe_add_kernel(x_ref, pe_ref, o_ref):
    # All refs are 2-D (tile_rows, 128): a clean vld + vld + vadd + vst stream.
    o_ref[...] = x_ref[...] + pe_ref[...]


def make_positional_encoding(d_model: int, max_length: int) -> jnp.ndarray:
    """Deterministic pe buffer, identical to the PyTorch __init__ math."""
    assert d_model % 2 == 0 or d_model % 2 == 1  # any d_model; sin/cos interleave below
    position = jnp.arange(0, max_length, dtype=jnp.float32)[:, None]            # (L, 1)
    div_term = jnp.exp(
        jnp.arange(0, d_model, 2, dtype=jnp.float32) * (-math.log(10000.0) / d_model)
    )                                                                             # (ceil(D/2),)
    angles = position * div_term                                                  # (L, ceil(D/2))
    pe = jnp.zeros((max_length, d_model), dtype=jnp.float32)
    pe = pe.at[:, 0::2].set(jnp.sin(angles)[:, : pe[:, 0::2].shape[1]])
    pe = pe.at[:, 1::2].set(jnp.cos(angles)[:, : pe[:, 1::2].shape[1]])
    return pe[None, :, :]                                                         # (1, L, D)


def positional_encoding_forward(
    x: jnp.ndarray,
    pe: jnp.ndarray,
    *,
    target_block_bytes: int = _TARGET_BLOCK_BYTES,
    vmem_limit_bytes: int = _VMEM_LIMIT_BYTES,
) -> jnp.ndarray:
    """x: (B, S, D), pe: (1, S, D) -> (B, S, D)."""
    B, S, D = x.shape
    assert pe.shape == (1, S, D), "pe must match (1, max_length, d_model)"

    # Match dtypes so the in-kernel add does not promote (keeps bf16 traffic bf16).
    pe = pe.astype(x.dtype)

    itemsize = jnp.dtype(x.dtype).itemsize
    # dtype-native sublane multiple: 8 (f32), 16 (bf16), 32 (int8/fp8).
    sub = max(8, (8 * 4) // itemsize)

    # --- Lane-dense view: pad the flattened per-batch slab to a multiple of 128.
    flat = S * D
    padded_flat = pl.cdiv(flat, _LANE) * _LANE
    pad = padded_flat - flat
    x_flat = x.reshape(B, flat)
    pe_flat = pe.reshape(flat)
    if pad:
        # TODO(synk): a fused masked-store path would avoid this extra pad pass.
        x_flat = jnp.pad(x_flat, ((0, 0), (0, pad)))
        pe_flat = jnp.pad(pe_flat, ((0, pad),))
    rows = padded_flat // _LANE
    cols = _LANE
    row_bytes = cols * itemsize
    per_batch_bytes = rows * row_bytes
    target_rows = max(1, target_block_bytes // row_bytes)

    bytes_accessed = (2 * B * padded_flat + padded_flat) * itemsize
    flops = B * padded_flat

    # --- Choose grid layout.
    use_collapsed = per_batch_bytes < target_block_bytes
    k = 0
    if use_collapsed:
        max_k = max(1, target_rows // rows)
        if B <= max_k:
            k = B                                   # one tile per k batches; tr is full extent
        else:
            for d in range(max_k, 1, -1):           # need k | B and sublane-aligned tile
                if B % d == 0 and (d * rows) % sub == 0:
                    k = d
                    break
            if k == 0 and rows % sub == 0:
                k = 1
        if k == 0:
            use_collapsed = False                   # rare: fall back to per-batch grid

    if use_collapsed:
        # Collapsed layout: (B*rows, 128), 1-D grid, pe pre-tiled to one resident block.
        total_rows = B * rows
        tr = k * rows
        x2 = x_flat.reshape(total_rows, cols)
        pe_tiled = jnp.tile(pe_flat.reshape(rows, cols), (k, 1))   # (tr, cols)
        grid = (total_rows // tr,)                                  # exact: k divides B

        out = pl.pallas_call(
            _pe_add_kernel,
            out_shape=jax.ShapeDtypeStruct((total_rows, cols), x.dtype),
            grid_spec=pltpu.PrefetchScalarGridSpec(
                num_scalar_prefetch=0,
                grid=grid,
                in_specs=[
                    pl.BlockSpec((tr, cols), lambda r: (r, 0)),   # x tile
                    pl.BlockSpec((tr, cols), lambda r: (0, 0)),   # pe: constant block, fetched once
                ],
                out_specs=pl.BlockSpec((tr, cols), lambda r: (r, 0)),
            ),
            compiler_params=pltpu.CompilerParams(
                dimension_semantics=("parallel",),
                vmem_limit_bytes=vmem_limit_bytes,
            ),
            cost_estimate=pl.CostEstimate(
                flops=flops, transcendentals=0, bytes_accessed=bytes_accessed
            ),
        )(x2, pe_tiled)
        out_flat = out.reshape(B, padded_flat)
    else:
        # Batched layout: (B, rows, 128), grid (row_tiles, B) with batch innermost
        # so the pe block index is constant across consecutive steps.
        x3 = x_flat.reshape(B, rows, cols)
        pe2 = pe_flat.reshape(rows, cols)
        if per_batch_bytes <= target_block_bytes:
            tr = rows                                             # full extent (always legal)
        else:
            tr = max(sub, (target_rows // sub) * sub)
        grid = (pl.cdiv(rows, tr), B)

        out = pl.pallas_call(
            _pe_add_kernel,
            out_shape=jax.ShapeDtypeStruct((B, rows, cols), x.dtype),
            grid_spec=pltpu.PrefetchScalarGridSpec(
                num_scalar_prefetch=0,
                grid=grid,
                in_specs=[
                    pl.BlockSpec((pl.Squeezed(), tr, cols), lambda r, b: (b, r, 0)),  # x
                    pl.BlockSpec((tr, cols), lambda r, b: (r, 0)),                    # pe (reused over b)
                ],
                out_specs=pl.BlockSpec((pl.Squeezed(), tr, cols), lambda r, b: (b, r, 0)),
            ),
            compiler_params=pltpu.CompilerParams(
                # rows parallel (balanced v7x megacore split), batch arbitrary
                # (preserves the pe-constant inner loop per core).
                dimension_semantics=("parallel", "arbitrary"),
                vmem_limit_bytes=vmem_limit_bytes,
            ),
            cost_estimate=pl.CostEstimate(
                flops=flops, transcendentals=0, bytes_accessed=bytes_accessed
            ),
        )(x3, pe2)
        out_flat = out.reshape(B, padded_flat)

    if pad:
        out_flat = out_flat[:, :flat]
    return out_flat.reshape(B, S, D)


if __name__ == "__main__":
    key = jax.random.PRNGKey(0)

    # 1) Primary check: lane-dense collapsed path (S*D = 256, multiple of 128).
    B, max_length, d_model = 2, 8, 32
    x = jax.random.normal(key, (B, max_length, d_model), dtype=jnp.float32)
    pe = make_positional_encoding(d_model, max_length)
    out = jax.block_until_ready(positional_encoding_forward(x, pe))
    ref = x + pe
    assert out.shape == (B, max_length, d_model)
    assert jnp.allclose(out, ref, atol=1e-6, rtol=1e-6)

    # 2) Padded path (S*D = 240, not a multiple of 128 -> zero-pad + slice back).
    d_model2 = 30
    x2 = jax.random.normal(jax.random.PRNGKey(1), (B, max_length, d_model2), dtype=jnp.float32)
    pe2 = make_positional_encoding(d_model2, max_length)
    out2 = jax.block_until_ready(positional_encoding_forward(x2, pe2))
    assert jnp.allclose(out2, x2 + pe2, atol=1e-6, rtol=1e-6)

    # 3) Batched layout (squeezed batch dim, multi-step grid) forced via a tiny
    #    target block so the test stays small.
    L3, D3 = 64, 32
    x3 = jax.random.normal(jax.random.PRNGKey(2), (B, L3, D3), dtype=jnp.float32)
    pe3 = make_positional_encoding(D3, L3)
    out3 = jax.block_until_ready(
        positional_encoding_forward(x3, pe3, target_block_bytes=4096)
    )
    assert jnp.allclose(out3, x3 + pe3, atol=1e-6, rtol=1e-6)

    # 4) Collapsed layout with k < B (pe pre-tiled to one resident block,
    #    multi-step 1-D grid), forced via a small target block.
    B4, L4, D4 = 4, 16, 128
    x4 = jax.random.normal(jax.random.PRNGKey(3), (B4, L4, D4), dtype=jnp.float32)
    pe4 = make_positional_encoding(D4, L4)
    out4 = jax.block_until_ready(
        positional_encoding_forward(x4, pe4, target_block_bytes=16384)
    )
    assert jnp.allclose(out4, x4 + pe4, atol=1e-6, rtol=1e-6)

    print("KERNEL_OK")
</pallas_src>

<mosaic_0001>
module attributes {stable_mosaic.version = 11 : i64} {
  func.func @_pe_add_kernel(%arg0: i32, %arg1: memref<4x128xf32, #tpu.memory_space<vmem>>, %arg2: memref<4x128xf32, #tpu.memory_space<vmem>>, %arg3: memref<4x128xf32, #tpu.memory_space<vmem>>) attributes {dimension_semantics = [#tpu.dimension_semantics<parallel>], iteration_bounds = array<i64: 1>, scalar_prefetch = 0 : i64, scratch_operands = 0 : i64, tpu.core_type = #tpu.core_type<tc>, window_params = [{transform_indices = @transform_0, window_bounds = array<i64: 4, 128>}, {pipeline_mode = #tpu.pipeline_mode<synchronous>, transform_indices = @transform_1, window_bounds = array<i64: 4, 128>}, {transform_indices = @transform_2, window_bounds = array<i64: 4, 128>}]} {
    %c0 = arith.constant 0 : index
    %c0_0 = arith.constant 0 : index
    %0 = vector.load %arg1[%c0, %c0_0] : memref<4x128xf32, #tpu.memory_space<vmem>>, vector<4x128xf32>
    %c0_1 = arith.constant 0 : index
    %c0_2 = arith.constant 0 : index
    %1 = vector.load %arg2[%c0_1, %c0_2] : memref<4x128xf32, #tpu.memory_space<vmem>>, vector<4x128xf32>
    %2 = arith.addf %0, %1 : vector<4x128xf32>
    %c0_3 = arith.constant 0 : index
    %c0_4 = arith.constant 0 : index
    %3 = vector.load %arg3[%c0_3, %c0_4] : memref<4x128xf32, #tpu.memory_space<vmem>>, vector<4x128xf32>
    tpu.vector_store %arg3[%c0_3, %c0_4], %2 {strides = array<i32>} : memref<4x128xf32, #tpu.memory_space<vmem>>, vector<4x128xf32>,
    return
  }
  func.func @transform_0(%arg0: i32) -> (i32, i32) {
    %c0_i32 = arith.constant 0 : i32
    %c0_i32_0 = arith.constant 0 : i32
    return %arg0, %c0_i32 : i32, i32
  }
  func.func @transform_1(%arg0: i32) -> (i32, i32) {
    %c0_i32 = arith.constant 0 : i32
    %c0_i32_0 = arith.constant 0 : i32
    %c0_i32_1 = arith.constant 0 : i32
    return %c0_i32, %c0_i32_0 : i32, i32
  }
  func.func @transform_2(%arg0: i32) -> (i32, i32) {
    %c0_i32 = arith.constant 0 : i32
    %c0_i32_0 = arith.constant 0 : i32
    return %arg0, %c0_i32 : i32, i32
  }
}

</mosaic_0001>

<llo_original>
// kernel: tpu_custom_call.1
$region0: #{tpu_custom_call.1}
  #allocation0 [shape = 'u32[]', space=smem, size = 0x4, offset = 0x4, fixed_abs, tag = 'smem constant byte address 0x4 - core index']
  #allocation1 [shape = 'u32[144,128]{1,0:T(1,128)}', space=vmem, size = 0x12000, scoped, tag = 'internal scratch']
  %s0 = inlined_call_operand.hbm [shape: f32[4,128], index: 0, kind: input, shape index: {}]
  %s1 = inlined_call_operand.hbm [shape: f32[4,128], index: 1, kind: input, shape index: {}]
  %s2 = inlined_call_operand.hbm [shape: f32[4,128], index: 2, kind: output, shape index: {}]
  %s3 = sld [smem:[#allocation0]]
  $region26: #{tpu_custom_call.1} parent=0
    _
  %s5 = ssub.s32 1, %s3
  %s6 = scalar_select 0, %s5, %s3
  $region1: #{tpu_custom_call.1} parent=0
    #allocation2 [shape = 'u8[2048]{0}', space=vmem, size = 0x800, scoped, tag = 'input window, operand 0, single buffered']
    #allocation3 [shape = 's32[1]{0}', space=sflag, size = 0x4, scoped, tag = 'scoped memory for tpu_custom_call.1']
    #allocation4 [shape = 's32[1]{0}', space=sflag, size = 0x4, scoped, tag = 'scoped memory for tpu_custom_call.1']
    #allocation5 [shape = 'u8[2048]{0}', space=vmem, size = 0x800, scoped, tag = 'input window, operand 1, single buffered']
    #allocation6 [shape = 's32[1]{0}', space=sflag, size = 0x4, scoped, tag = 'scoped memory for tpu_custom_call.1']
    #allocation7 [shape = 'u8[2048]{0}', space=vmem, size = 0x800, scoped, tag = 'output window, operand 0, single buffered']
    %7 = vsyncpa [#allocation3], 0
    %8 = vsyncpa [#allocation6], 0
    %9 = vsyncpa [#allocation4], 0
    // Predicated region
    $region2: #{tpu_custom_call.1} parent=1 // pred_check
      _
    $region3: #{tpu_custom_call.1} parent=1 // pred_check_branch
      %11 = sbr.rel (0) target = $region5
    $region4: #{tpu_custom_call.1} parent=1 // pred_region
      %s13 = ssub.s32 64, 64
      %14 = vsyncadd [#allocation3], %s13
      %s16 = sshll.u32 [#allocation2], 4
      %s17 = int_to_ptr.vmem [resolvable:$true] %s16
      %19 = dma.hbm_to_vmem [thread:$0]  %s0, 64, %s17, [#allocation3]
    $region5: #{tpu_custom_call.1} parent=1 // pred_fallthru
      _
    // Predicated region
    $region6: #{tpu_custom_call.1} parent=1 // pred_check
      _
    $region7: #{tpu_custom_call.1} parent=1 // pred_check_branch
      %21 = sbr.rel (0) target = $region9
    $region8: #{tpu_custom_call.1} parent=1 // pred_region
      %s23 = ssub.s32 64, 64
      %24 = vsyncadd [#allocation6], %s23
      %s26 = sshll.u32 [#allocation5], 4
      %s27 = int_to_ptr.vmem [resolvable:$true] %s26
      %29 = dma.hbm_to_vmem [thread:$0]  %s1, 64, %s27, [#allocation6]
    $region9: #{tpu_custom_call.1} parent=1 // pred_fallthru
      _
    // Predicated region
    $region10: #{tpu_custom_call.1} parent=1 // pred_check
      _
    $region11: #{tpu_custom_call.1} parent=1 // pred_check_branch
      %31 = sbr.rel (0) target = $region13
    $region12: #{tpu_custom_call.1} parent=1 // pred_region
      %32 = dma.done [#allocation3], 64
    $region13: #{tpu_custom_call.1} parent=1 // pred_fallthru
      _
    // Predicated region
    $region14: #{tpu_custom_call.1} parent=1 // pred_check
      _
    $region15: #{tpu_custom_call.1} parent=1 // pred_check_branch
      %34 = sbr.rel (0) target = $region17
    $region16: #{tpu_custom_call.1} parent=1 // pred_region
      %35 = dma.done [#allocation6], 64
    $region17: #{tpu_custom_call.1} parent=1 // pred_fallthru
      _
    %v36 = vld [vmem:[#allocation2] sm:$0xf]
    %v37 = vld [vmem:[#allocation5] sm:$0xf]
    %v38 = vadd.f32 %v36, %v37
    %39 = vst [vmem:[#allocation7] sm:$0xf] %v38
    // Predicated region
    $region18: #{tpu_custom_call.1} parent=1 // pred_check
      _
    $region19: #{tpu_custom_call.1} parent=1 // pred_check_branch
      %41 = sbr.rel (0) target = $region21
    $region20: #{tpu_custom_call.1} parent=1 // pred_region
      %s43 = ssub.s32 64, 64
      %44 = vsyncadd [#allocation4], %s43
      %s46 = sshll.u32 [#allocation7], 4
      %s47 = int_to_ptr.vmem [resolvable:$true] %s46
      %49 = dma.vmem_to_hbm [thread:$0]  %s47, 64, %s2, [#allocation4]
    $region21: #{tpu_custom_call.1} parent=1 // pred_fallthru
      _
    // Predicated region
    $region22: #{tpu_custom_call.1} parent=1 // pred_check
      _
    $region23: #{tpu_custom_call.1} parent=1 // pred_check_branch
      %51 = sbr.rel (0) target = $region25
    $region24: #{tpu_custom_call.1} parent=1 // pred_region
      %52 = dma.done [#allocation4], 64
    $region25: #{tpu_custom_call.1} parent=1 // pred_fallthru
      _
    %53 = vsyncpa [#allocation3], 1
    %54 = vsyncpa [#allocation6], 1
    %55 = vsyncpa [#allocation4], 1

</llo_original>
